<compile_context>
chip_gen: v5e
topology: v5e:2x2
jax: 0.10.0
libtpu: 0.0.40
codegen_flags: <defaults>
</compile_context>

<pallas_src>
import jax
import jax.numpy as jnp
from jax.experimental import pallas as pl
from jax.experimental.pallas import tpu as pltpu

_MIB = 1024 * 1024


def _round_up(x, m):
    return ((x + m - 1) // m) * m


def _vmem_capacity_bytes():
    """Per-core VMEM capacity, with a conservative (v7x) fallback."""
    default = 64 * _MIB
    get_info = getattr(pltpu, "get_tpu_info", None)
    if get_info is None:
        return default
    try:
        cap = getattr(get_info(), "vmem_capacity_bytes", None)
        return int(cap) if cap else default
    except Exception:
        return default


# ---------------------------------------------------------------------------
# Kernel factory
# ---------------------------------------------------------------------------
def _make_gcn_kernel(w_last, feat_resident, tk):
    """Builds the kernel for the chosen contraction order / feature residency."""

    def _feat_chunk(x_ref, k):
        if feat_resident:
            # Whole feature matrix is VMEM-resident; slice the k-chunk.
            return x_ref[pl.ds(pl.multiple_of(k * tk, tk), tk), :]
        return x_ref[...]

    if w_last:
        def kernel(mask_ref, a_ref, x_ref, w_ref, b_ref, o_ref, acc_ref):
            k = pl.program_id(1)
            nk = pl.num_programs(1)

            @pl.when(k == 0)
            def _init():
                acc_ref[...] = jnp.zeros_like(acc_ref)

            # Skip the MXU work for all-zero A_hat tiles (block sparsity).
            @pl.when(mask_ref[pl.program_id(0) * nk + k] != 0)
            def _accum():
                acc_ref[...] += jnp.dot(a_ref[...], _feat_chunk(x_ref, k),
                                        preferred_element_type=jnp.float32)

            @pl.when(k == nk - 1)
            def _finalize():
                # bf16 x bf16 finalize matmul (single-pass MXU), f32 accumulate.
                h = jnp.dot(acc_ref[...].astype(jnp.bfloat16), w_ref[...],
                            preferred_element_type=jnp.float32)
                o_ref[...] = jnp.maximum(h + b_ref[...], 0.0).astype(o_ref.dtype)

        return kernel

    def kernel(mask_ref, a_ref, xw_ref, b_ref, o_ref, acc_ref):
        k = pl.program_id(1)
        nk = pl.num_programs(1)

        @pl.when(k == 0)
        def _init():
            acc_ref[...] = jnp.zeros_like(acc_ref)

        @pl.when(mask_ref[pl.program_id(0) * nk + k] != 0)
        def _accum():
            acc_ref[...] += jnp.dot(a_ref[...], _feat_chunk(xw_ref, k),
                                    preferred_element_type=jnp.float32)

        @pl.when(k == nk - 1)
        def _finalize():
            o_ref[...] = jnp.maximum(acc_ref[...] + b_ref[...],
                                     0.0).astype(o_ref.dtype)

    return kernel


# ---------------------------------------------------------------------------
# Wrapper
# ---------------------------------------------------------------------------
def gnn_layer_forward(x, edge_index, weight, bias, *, tile=None):
    """Equivalent of: relu(GCNConv(in_c, out_c)(x, edge_index)).

    x          : (N, C_in)     float32
    edge_index : (2, E)        int32, [source; target] (PyG convention)
    weight     : (C_out, C_in) float32 (GCNConv linear weight)
    bias       : (C_out,)      float32
    """
    num_nodes, c_in = x.shape
    c_out = weight.shape[0]

    # ---- glue: D^{-1/2}(A+I)D^{-1/2} normalization (matches PyG gcn_norm) ---
    row, col = edge_index[0], edge_index[1]
    loop = jnp.arange(num_nodes, dtype=edge_index.dtype)
    row = jnp.concatenate([row, loop])          # sources (A_hat column index)
    col = jnp.concatenate([col, loop])          # targets (A_hat row index)
    ew = jnp.ones(row.shape[0], dtype=jnp.float32)
    deg = jnp.zeros((num_nodes,), jnp.float32).at[col].add(ew)
    deg_inv_sqrt = jnp.where(deg > 0, 1.0 / jnp.sqrt(deg), 0.0)
    norm = deg_inv_sqrt[row] * deg_inv_sqrt[col]

    # ---- contraction order: stream the narrower intermediate ---------------
    w_last = c_in <= c_out
    if w_last:
        feat = x                                # stream X, apply W in finalize
        cf = c_in
    else:
        feat = x @ weight.T                     # cheap N*C_in*C_out vs N^2 agg
        cf = c_out
    cf_pad = _round_up(cf, 128)
    c_out_pad = _round_up(c_out, 128)

    # ---- generation-aware tile / VMEM budget --------------------------------
    vmem_cap = _vmem_capacity_bytes()
    # v5e/v6e (128 MiB) get a big scoped limit; v7x (64 MiB) keeps headroom.
    vmem_limit = int(max(32 * _MIB, min(vmem_cap - 16 * _MIB, 100 * _MIB)))
    budget = int(vmem_limit * 0.85)             # headroom for compiler scratch

    if tile is None:
        tile = 2048 if vmem_cap >= 96 * _MIB else 1024

    def _working_set(tm_, tk_, feat_vmem_bytes):
        ws = 2 * tm_ * tk_ * 2                  # A_hat tiles, bf16, 2 buffers
        ws += tm_ * cf_pad * 4                  # f32 accumulator scratch
        ws += 2 * tm_ * c_out_pad * 4           # f32 output tile, 2 buffers
        ws += 2 * c_out_pad * 4                 # bias
        if w_last:
            ws += 2 * cf_pad * c_out_pad * 2    # bf16 W, 2 buffers
        return ws + feat_vmem_bytes

    if num_nodes >= tile:
        while tile > 256 and _working_set(tile, tile, 2 * tile * cf_pad * 2) > budget:
            tile //= 2
        n_pad = _round_up(num_nodes, tile)
        tm = tk = tile
    else:
        # Small graphs: still split the row axis into >= 2 tiles so the
        # "parallel" axis can shard across v7x's two TensorCores.
        n_pad = _round_up(max(num_nodes, 256), 256)
        tm = max(n_pad // 2, 128)
        tk = n_pad

    grid = (n_pad // tm, n_pad // tk)

    # Keep the whole feature matrix VMEM-resident when it fits -> the feature
    # stream is read from HBM exactly once instead of once per row tile.
    feat_resident = _working_set(tm, tk, 2 * n_pad * cf_pad * 2) <= budget

    # ---- padded, lane-dense operands (single materialization of A_hat) -----
    a_p = (jnp.zeros((n_pad, n_pad), jnp.float32)
           .at[col, row].add(norm)).astype(jnp.bfloat16)
    f_p = (jnp.zeros((n_pad, cf_pad), jnp.bfloat16)
           .at[:num_nodes, :cf].set(feat.astype(jnp.bfloat16)))
    b_p = jnp.zeros((1, c_out_pad), jnp.float32).at[0, :c_out].set(
        bias.astype(jnp.float32))

    # ---- per-tile nonzero bitmap for block-sparse compute skipping ---------
    tile_r = col // tm                          # A_hat row index -> row tile
    tile_c = row // tk                          # A_hat col index -> k tile
    nz = jnp.zeros((grid[0], grid[1]), jnp.int32).at[tile_r, tile_c].add(1)
    tile_mask = (nz.reshape(-1) > 0).astype(jnp.int32)

    # ---- specs --------------------------------------------------------------
    a_spec = pl.BlockSpec((tm, tk), lambda i, k, m: (i, k))
    if feat_resident:
        f_spec = pl.BlockSpec((n_pad, cf_pad), lambda i, k, m: (0, 0))
    else:
        f_spec = pl.BlockSpec((tk, cf_pad), lambda i, k, m: (k, 0))
    b_spec = pl.BlockSpec((1, c_out_pad), lambda i, k, m: (0, 0))
    out_spec = pl.BlockSpec((tm, c_out_pad), lambda i, k, m: (i, 0))

    flops = 2 * n_pad * n_pad * cf_pad
    bytes_accessed = (2 * n_pad * n_pad                               # A_hat bf16
                      + 2 * n_pad * cf_pad * (1 if feat_resident else grid[0])
                      + 4 * n_pad * c_out_pad)                        # f32 out

    if w_last:
        w_p = (jnp.zeros((cf_pad, c_out_pad), jnp.bfloat16)
               .at[:c_in, :c_out].set(weight.T.astype(jnp.bfloat16)))
        w_spec = pl.BlockSpec((cf_pad, c_out_pad), lambda i, k, m: (0, 0))
        in_specs = [a_spec, f_spec, w_spec, b_spec]
        args = (a_p, f_p, w_p, b_p)
        flops += 2 * n_pad * cf_pad * c_out_pad
        bytes_accessed += 2 * cf_pad * c_out_pad
    else:
        in_specs = [a_spec, f_spec, b_spec]
        args = (a_p, f_p, b_p)

    kernel = _make_gcn_kernel(w_last, feat_resident, tk)

    out_p = pl.pallas_call(
        kernel,
        out_shape=jax.ShapeDtypeStruct((n_pad, c_out_pad), jnp.float32),
        grid_spec=pltpu.PrefetchScalarGridSpec(
            num_scalar_prefetch=1,
            grid=grid,
            in_specs=in_specs,
            out_specs=out_spec,
            scratch_shapes=[pltpu.VMEM((tm, cf_pad), jnp.float32)],
        ),
        compiler_params=pltpu.CompilerParams(
            dimension_semantics=("parallel", "arbitrary"),
            vmem_limit_bytes=vmem_limit,
        ),
        cost_estimate=pl.CostEstimate(
            flops=int(flops),
            transcendentals=0,
            bytes_accessed=int(bytes_accessed),
        ),
    )(tile_mask, *args)

    return out_p[:num_nodes, :c_out]


# ---------------------------------------------------------------------------
# Pure-JAX reference (float32) for correctness checking
# ---------------------------------------------------------------------------
def _reference(x, edge_index, weight, bias):
    num_nodes = x.shape[0]
    row, col = edge_index[0], edge_index[1]
    loop = jnp.arange(num_nodes, dtype=edge_index.dtype)
    row = jnp.concatenate([row, loop])
    col = jnp.concatenate([col, loop])
    ew = jnp.ones(row.shape[0], jnp.float32)
    deg = jnp.zeros((num_nodes,), jnp.float32).at[col].add(ew)
    dis = jnp.where(deg > 0, 1.0 / jnp.sqrt(deg), 0.0)
    norm = dis[row] * dis[col]
    xw = x @ weight.T
    msg = norm[:, None] * xw[row]
    agg = jnp.zeros((num_nodes, weight.shape[0]), jnp.float32).at[col].add(msg)
    return jnp.maximum(agg + bias[None, :], 0.0)


if __name__ == "__main__":
    key = jax.random.PRNGKey(0)
    k_x, k_e, k_w, k_b = jax.random.split(key, 4)

    N, C_IN, C_OUT, E = 64, 16, 32, 256

    x = jax.random.normal(k_x, (N, C_IN), jnp.float32)
    edge_index = jax.random.randint(k_e, (2, E), 0, N, jnp.int32)

    # Deterministic GCNConv parameters (glorot-style weight, small bias).
    limit = (6.0 / (C_IN + C_OUT)) ** 0.5
    weight = jax.random.uniform(k_w, (C_OUT, C_IN), jnp.float32, -limit, limit)
    bias = jax.random.uniform(k_b, (C_OUT,), jnp.float32, -0.1, 0.1)

    out = gnn_layer_forward(x, edge_index, weight, bias)
    out = jax.block_until_ready(out)

    ref = _reference(x, edge_index, weight, bias)
    assert out.shape == (N, C_OUT)
    # A_hat, X and W are stored/fed to the MXU in bf16 (f32 accumulation), so
    # the tolerance vs. the all-f32 reference is relaxed accordingly.
    assert jnp.allclose(out, ref, atol=7.5e-2, rtol=5e-2), (
        float(jnp.max(jnp.abs(out - ref))))

    print("KERNEL_OK")
</pallas_src>

<mosaic_0001>
module attributes {stable_mosaic.version = 11 : i64} {
  func.func @kernel(%arg0: i32, %arg1: i32, %arg2: memref<2xi32, #tpu.memory_space<smem>>, %arg3: memref<128x256xbf16, #tpu.memory_space<vmem>>, %arg4: memref<256x128xbf16, #tpu.memory_space<vmem>>, %arg5: memref<128x128xbf16, #tpu.memory_space<vmem>>, %arg6: memref<1x128xf32, #tpu.memory_space<vmem>>, %arg7: memref<128x128xf32, #tpu.memory_space<vmem>>, %arg8: memref<128x128xf32, #tpu.memory_space<vmem>>) attributes {dimension_semantics = [#tpu.dimension_semantics<parallel>, #tpu.dimension_semantics<arbitrary>], iteration_bounds = array<i64: 2, 1>, scalar_prefetch = 1 : i64, scratch_operands = 1 : i64, tpu.core_type = #tpu.core_type<tc>, window_params = [{transform_indices = @transform_0, window_bounds = array<i64: 128, 256>}, {pipeline_mode = #tpu.pipeline_mode<synchronous>, transform_indices = @transform_1, window_bounds = array<i64: 256, 128>}, {pipeline_mode = #tpu.pipeline_mode<synchronous>, transform_indices = @transform_2, window_bounds = array<i64: 128, 128>}, {pipeline_mode = #tpu.pipeline_mode<synchronous>, transform_indices = @transform_3, window_bounds = array<i64: 1, 128>}, {transform_indices = @transform_4, window_bounds = array<i64: 128, 128>}]} {
    %c0_i32 = arith.constant 0 : i32
    %0 = arith.cmpi eq, %arg1, %c0_i32 : i32
    %1 = arith.extui %0 : i1 to i32
    %c0_i32_0 = arith.constant 0 : i32
    %2 = arith.cmpi ne, %1, %c0_i32_0 : i32
    scf.if %2 {
      %cst = arith.constant 0.000000e+00 : f32
      %13 = vector.broadcast %cst : f32 to vector<128x128xf32>
      %c0 = arith.constant 0 : index
      %c0_5 = arith.constant 0 : index
      %14 = vector.load %arg8[%c0, %c0_5] : memref<128x128xf32, #tpu.memory_space<vmem>>, vector<128x128xf32>
      tpu.vector_store %arg8[%c0, %c0_5], %13 {strides = array<i32>} : memref<128x128xf32, #tpu.memory_space<vmem>>, vector<128x128xf32>,
    } else {
    }
    %c1_i32 = arith.constant 1 : i32
    %3 = arith.muli %arg0, %c1_i32 : i32
    %4 = arith.addi %3, %arg1 : i32
    %5 = arith.index_cast %4 : i32 to index
    %6 = memref.load %arg2[%5] : memref<2xi32, #tpu.memory_space<smem>>
    %c0_i32_1 = arith.constant 0 : i32
    %7 = arith.cmpi ne, %6, %c0_i32_1 : i32
    %8 = arith.extui %7 : i1 to i32
    %c0_i32_2 = arith.constant 0 : i32
    %9 = arith.cmpi ne, %8, %c0_i32_2 : i32
    scf.if %9 {
      %c0 = arith.constant 0 : index
      %c0_5 = arith.constant 0 : index
      %13 = vector.load %arg8[%c0, %c0_5] : memref<128x128xf32, #tpu.memory_space<vmem>>, vector<128x128xf32>
      %c0_6 = arith.constant 0 : index
      %c0_7 = arith.constant 0 : index
      %14 = vector.load %arg3[%c0_6, %c0_7] : memref<128x256xbf16, #tpu.memory_space<vmem>>, vector<128x256xbf16>
      %c256_i32 = arith.constant 256 : i32
      %15 = arith.muli %arg1, %c256_i32 : i32
      %16 = tpu.assume_multiple %15, 256 : i32
      %17 = arith.index_cast %16 : i32 to index
      %c0_8 = arith.constant 0 : index
      %18 = vector.load %arg4[%17, %c0_8] : memref<256x128xbf16, #tpu.memory_space<vmem>>, vector<256x128xbf16>
      %cst = arith.constant dense<0.000000e+00> : vector<128x128xf32>
      %19 = tpu.matmul %14, %18, %cst {dimension_numbers = #tpu.dot_dimension_numbers<[1], [0], [0], [1], [0, 0, 1, 1], [], []>} : vector<128x256xbf16>, vector<256x128xbf16>, vector<128x128xf32> -> vector<128x128xf32>
      %20 = arith.addf %13, %19 : vector<128x128xf32>
      %c0_9 = arith.constant 0 : index
      %c0_10 = arith.constant 0 : index
      %21 = vector.load %arg8[%c0_9, %c0_10] : memref<128x128xf32, #tpu.memory_space<vmem>>, vector<128x128xf32>
      tpu.vector_store %arg8[%c0_9, %c0_10], %20 {strides = array<i32>} : memref<128x128xf32, #tpu.memory_space<vmem>>, vector<128x128xf32>,
    } else {
    }
    %c0_i32_3 = arith.constant 0 : i32
    %10 = arith.cmpi eq, %arg1, %c0_i32_3 : i32
    %11 = arith.extui %10 : i1 to i32
    %c0_i32_4 = arith.constant 0 : i32
    %12 = arith.cmpi ne, %11, %c0_i32_4 : i32
    scf.if %12 {
      %c0 = arith.constant 0 : index
      %c0_5 = arith.constant 0 : index
      %13 = vector.load %arg8[%c0, %c0_5] : memref<128x128xf32, #tpu.memory_space<vmem>>, vector<128x128xf32>
      %14 = arith.truncf %13 : vector<128x128xf32> to vector<128x128xbf16>
      %c0_6 = arith.constant 0 : index
      %c0_7 = arith.constant 0 : index
      %15 = vector.load %arg5[%c0_6, %c0_7] : memref<128x128xbf16, #tpu.memory_space<vmem>>, vector<128x128xbf16>
      %cst = arith.constant dense<0.000000e+00> : vector<128x128xf32>
      %16 = tpu.matmul %14, %15, %cst {dimension_numbers = #tpu.dot_dimension_numbers<[1], [0], [0], [1], [0, 0, 1, 1], [], []>} : vector<128x128xbf16>, vector<128x128xbf16>, vector<128x128xf32> -> vector<128x128xf32>
      %c0_8 = arith.constant 0 : index
      %c0_9 = arith.constant 0 : index
      %17 = vector.load %arg6[%c0_8, %c0_9] : memref<1x128xf32, #tpu.memory_space<vmem>>, vector<1x128xf32>
      %18 = vector.broadcast %17 : vector<1x128xf32> to vector<128x128xf32>
      %19 = arith.addf %16, %18 : vector<128x128xf32>
      %cst_10 = arith.constant 0.000000e+00 : f32
      %20 = vector.broadcast %cst_10 : f32 to vector<128x128xf32>
      %21 = arith.maximumf %19, %20 : vector<128x128xf32>
      %c0_11 = arith.constant 0 : index
      %c0_12 = arith.constant 0 : index
      %22 = vector.load %arg7[%c0_11, %c0_12] : memref<128x128xf32, #tpu.memory_space<vmem>>, vector<128x128xf32>
      tpu.vector_store %arg7[%c0_11, %c0_12], %21 {strides = array<i32>} : memref<128x128xf32, #tpu.memory_space<vmem>>, vector<128x128xf32>,
    } else {
    }
    return
  }
  func.func @transform_0(%arg0: i32, %arg1: i32, %arg2: memref<2xi32, #tpu.memory_space<smem>>) -> (i32, i32) {
    %c0_i32 = arith.constant 0 : i32
    return %arg0, %arg1 : i32, i32
  }
  func.func @transform_1(%arg0: i32, %arg1: i32, %arg2: memref<2xi32, #tpu.memory_space<smem>>) -> (i32, i32) {
    %c0_i32 = arith.constant 0 : i32
    %c0_i32_0 = arith.constant 0 : i32
    %c0_i32_1 = arith.constant 0 : i32
    return %c0_i32, %c0_i32_0 : i32, i32
  }
  func.func @transform_2(%arg0: i32, %arg1: i32, %arg2: memref<2xi32, #tpu.memory_space<smem>>) -> (i32, i32) {
    %c0_i32 = arith.constant 0 : i32
    %c0_i32_0 = arith.constant 0 : i32
    %c0_i32_1 = arith.constant 0 : i32
    return %c0_i32, %c0_i32_0 : i32, i32
  }
  func.func @transform_3(%arg0: i32, %arg1: i32, %arg2: memref<2xi32, #tpu.memory_space<smem>>) -> (i32, i32) {
    %c0_i32 = arith.constant 0 : i32
    %c0_i32_0 = arith.constant 0 : i32
    %c0_i32_1 = arith.constant 0 : i32
    return %c0_i32, %c0_i32_0 : i32, i32
  }
  func.func @transform_4(%arg0: i32, %arg1: i32, %arg2: memref<2xi32, #tpu.memory_space<smem>>) -> (i32, i32) {
    %c0_i32 = arith.constant 0 : i32
    %c0_i32_0 = arith.constant 0 : i32
    return %arg0, %c0_i32 : i32, i32
  }
}

</mosaic_0001>

<llo_original>
// kernel: tpu_custom_call.1
$region0: #{tpu_custom_call.1}
  #allocation0 [shape = 'u32[]', space=smem, size = 0x4, offset = 0x4, fixed_abs, tag = 'smem constant byte address 0x4 - core index']
  #allocation1 [shape = 'u32[72,128]{1,0:T(1,128)}', space=vmem, size = 0x9000, scoped, tag = 'internal scratch']
  #allocation2 [shape = 'f32[128,128]{1,0:T(8,128)}', space=vmem, size = 0x10000, scoped, tag = 'scratch operand']
  #allocation3 [shape = 's32[1]{0}', space=sflag, size = 0x4, scoped, tag = 'scoped memory for tpu_custom_call.1']
  #allocation4 [shape = 'u8[512]{0}', space=smem, size = 0x200, scoped, tag = 'prefetched SMEM operand 0']
  %s0 = inlined_call_operand.hbm [shape: s32[2], index: 0, kind: input, shape index: {}]
  %s1 = inlined_call_operand.hbm [shape: bf16[256,256], index: 1, kind: input, shape index: {}]
  %s2 = inlined_call_operand.hbm [shape: bf16[256,128], index: 2, kind: input, shape index: {}]
  %s3 = inlined_call_operand.hbm [shape: bf16[128,128], index: 3, kind: input, shape index: {}]
  %s4 = inlined_call_operand.vmem [shape: f32[1,128], index: 4, kind: input, shape index: {}]
  %s5 = inlined_call_operand.hbm [shape: f32[256,128], index: 5, kind: output, shape index: {}]
  %s6 = sld [smem:[#allocation0]]
  $region73: #{tpu_custom_call.1} parent=0
    _
  %s8 = ssub.s32 1, %s6
  %s9 = scalar_select 0, %s8, %s6
  %s11 = sshll.u32 %s0, 4
  %s12 = int_to_ptr.hbm [resolvable:$true] %s11
  %14 = dma.hbm_to_smem %s12, 16, [#allocation4], [#allocation3]
  %16 = dma.done [#allocation3], 16
  %17 = sfence
  $region1: #{tpu_custom_call.1} parent=0
    #allocation5 [shape = 'u8[131072]{0}', space=vmem, size = 0x20000, scoped, tag = 'input window, operand 1']
    #allocation6 [shape = 's32[2]{0}', space=sflag, size = 0x8, scoped, tag = 'scoped memory for tpu_custom_call.1']
    #allocation7 [shape = 's32[2]{0}', space=sflag, size = 0x8, scoped, tag = 'scoped memory for tpu_custom_call.1']
    #allocation8 [shape = 'u8[65536]{0}', space=vmem, size = 0x10000, scoped, tag = 'input window, operand 2, single buffered']
    #allocation9 [shape = 's32[1]{0}', space=sflag, size = 0x4, scoped, tag = 'scoped memory for tpu_custom_call.1']
    #allocation10 [shape = 'u8[32768]{0}', space=vmem, size = 0x8000, scoped, tag = 'input window, operand 3, single buffered']
    #allocation11 [shape = 'u8[131072]{0}', space=vmem, size = 0x20000, scoped, tag = 'output window, operand 0']
    %18 = vsyncpa [#allocation6], 0
    %s19 = scalar_lea.sflag [#allocation6], 1
    %20 = vsyncpa %s19, 0
    %21 = vsyncpa [#allocation9], 0
    %22 = vsyncpa [#allocation7], 0
    %s23 = scalar_lea.sflag [#allocation7], 1
    %24 = vsyncpa %s23, 0
    loop: start=0, step=1, limit=4
    $region2: #{tpu_custom_call.1} parent=1 // loop_pre_header
      _
    $region3: #{tpu_custom_call.1} parent=1 // loop_header
      %s26 = sphi 0, %s30
      %p27 = scmp.ge.s32.totalorder %s26, 4
      %s33 = sphi 0, %s45
      %s34 = sphi 0, %s41
      %s35 = sphi 0, %s33
      %s36 = sphi 0, %s34
      %s37 = sphi 0, %s35
      %s38 = sphi 0, %s36
      %s50 = sphi 0, %s52
      %s53 = sphi 0, %s50
      %s54 = sphi 0, %s53
      %s70 = sphi 0, %s54
      %s74 = sphi 0, %s74
      %s76 = sphi 0, %s74
      %s77 = sphi 0, %s76
      %s91 = sphi 0, %s77
      %s95 = sphi 0, %s95
      %s97 = sphi 0, %s95
      %s98 = sphi 0, %s97
      %s112 = sphi 0, %s98
      %s116 = sphi 0, %s116
      %s118 = sphi 0, %s116
      %s119 = sphi 0, %s118
      %s133 = sphi 0, %s119
      %s139 = sphi 0, %s141
      %s142 = sphi 0, %s139
      %s143 = sphi 0, %s142
      %s159 = sphi 0, %s143
    $region4: #{tpu_custom_call.1} parent=1 // loop_header_branch
      %29 = sbr.rel (%p27) target = $region8
    $region5: #{tpu_custom_call.1} parent=1 // loop_body
      %s31 = ssub.s32 %s26, 1
      %s32 = ssub.s32 %s26, 2
      %s39 = sadd.s32 1, %s34
      %p40 = scmp.ge.s32.totalorder %s39, 1
      %s41 = scalar_select %p40, 0, %s39
      %s42 = sadd.s32 1, %s33
      %s43 = scalar_select %p40, %s42, %s33
      %p44 = scmp.ge.s32.totalorder %s43, 2
      %s45 = scalar_select %p44, 0, %s43
      %s46 = ssub.s32 %s33, %s45
      %s47 = ssub.s32 %s34, %s41
      %s48 = sor.u32 %s46, %s47
      %p49 = scmp.eq.s32.totalorder %s48, 0
      %s51 = sadd.s32 %s50, 1
      %s52 = scalar_select %p49, %s50, %s51
      %p55 = pneg %p49
      %p56 = scmp.eq.s32.totalorder %s26, 1
      %p57 = por %p55, %p56
      %p58 = scmp.ne.s32.totalorder %s50, %s53
      %p59 = scmp.eq.s32.totalorder %s26, 0
      %p60 = por %p58, %p59
      %p61 = scmp.ne.s32.totalorder %s50, %s53
      %p62 = scmp.eq.s32.totalorder %s31, 1
      %p63 = por %p61, %p62
      %p64 = scmp.ne.s32.totalorder %s53, %s54
      %p65 = scmp.eq.s32.totalorder %s31, 0
      %p66 = por %p64, %p65
      %p67 = scmp.ne.s32.totalorder %s53, %s54
      %p68 = scmp.eq.s32.totalorder %s32, 1
      %p69 = por %p67, %p68
      %p71 = scmp.ne.s32.totalorder %s54, %s70
      %p72 = scmp.eq.s32.totalorder %s32, 0
      %p73 = por %p71, %p72
      %s75 = sadd.s32 %s74, 1
      %p78 = scmp.eq.s32.totalorder %s26, 1
      %p79 = scmp.ne.s32.totalorder %s74, %s76
      %p80 = scmp.eq.s32.totalorder %s26, 0
      %p81 = por %p79, %p80
      %p82 = scmp.ne.s32.totalorder %s74, %s76
      %p83 = scmp.eq.s32.totalorder %s31, 1
      %p84 = por %p82, %p83
      %p85 = scmp.ne.s32.totalorder %s76, %s77
      %p86 = scmp.eq.s32.totalorder %s31, 0
      %p87 = por %p85, %p86
      %p88 = scmp.ne.s32.totalorder %s76, %s77
      %p89 = scmp.eq.s32.totalorder %s32, 1
      %p90 = por %p88, %p89
      %p92 = scmp.ne.s32.totalorder %s77, %s91
      %p93 = scmp.eq.s32.totalorder %s32, 0
      %p94 = por %p92, %p93
      %s96 = sadd.s32 %s95, 1
      %p99 = scmp.eq.s32.totalorder %s26, 1
      %p100 = scmp.ne.s32.totalorder %s95, %s97
      %p101 = scmp.eq.s32.totalorder %s26, 0
      %p102 = por %p100, %p101
      %p103 = scmp.ne.s32.totalorder %s95, %s97
      %p104 = scmp.eq.s32.totalorder %s31, 1
      %p105 = por %p103, %p104
      %p106 = scmp.ne.s32.totalorder %s97, %s98
      %p107 = scmp.eq.s32.totalorder %s31, 0
      %p108 = por %p106, %p107
      %p109 = scmp.ne.s32.totalorder %s97, %s98
      %p110 = scmp.eq.s32.totalorder %s32, 1
      %p111 = por %p109, %p110
      %p113 = scmp.ne.s32.totalorder %s98, %s112
      %p114 = scmp.eq.s32.totalorder %s32, 0
      %p115 = por %p113, %p114
      %s117 = sadd.s32 %s116, 1
      %p120 = scmp.eq.s32.totalorder %s26, 1
      %p121 = scmp.ne.s32.totalorder %s116, %s118
      %p122 = scmp.eq.s32.totalorder %s26, 0
      %p123 = por %p121, %p122
      %p124 = scmp.ne.s32.totalorder %s116, %s118
      %p125 = scmp.eq.s32.totalorder %s31, 1
      %p126 = por %p124, %p125
      %p127 = scmp.ne.s32.totalorder %s118, %s119
      %p128 = scmp.eq.s32.totalorder %s31, 0
      %p129 = por %p127, %p128
      %p130 = scmp.ne.s32.totalorder %s118, %s119
      %p131 = scmp.eq.s32.totalorder %s32, 1
      %p132 = por %p130, %p131
      %p134 = scmp.ne.s32.totalorder %s119, %s133
      %p135 = scmp.eq.s32.totalorder %s32, 0
      %p136 = por %p134, %p135
      %s137 = ssub.s32 %s33, %s45
      %p138 = scmp.eq.s32.totalorder %s137, 0
      %s140 = sadd.s32 %s139, 1
      %s141 = scalar_select %p138, %s139, %s140
      %p144 = pneg %p138
      %p145 = scmp.eq.s32.totalorder %s26, 1
      %p146 = por %p144, %p145
      %p147 = scmp.ne.s32.totalorder %s139, %s142
      %p148 = scmp.eq.s32.totalorder %s26, 0
      %p149 = por %p147, %p148
      %p150 = scmp.ne.s32.totalorder %s139, %s142
      %p151 = scmp.eq.s32.totalorder %s31, 1
      %p152 = por %p150, %p151
      %p153 = scmp.ne.s32.totalorder %s142, %s143
      %p154 = scmp.eq.s32.totalorder %s31, 0
      %p155 = por %p153, %p154
      %p156 = scmp.ne.s32.totalorder %s142, %s143
      %p157 = scmp.eq.s32.totalorder %s32, 1
      %p158 = por %p156, %p157
      %p160 = scmp.ne.s32.totalorder %s143, %s159
      %p161 = scmp.eq.s32.totalorder %s32, 0
      %p162 = por %p160, %p161
      %p163 = scmp.le.s32.totalorder 1, %s26
      %p164 = scmp.lt.s32.totalorder %s26, 3
      %p165 = pnand %p163, %p164
      %p166 = pneg %p165
      // Predicated region
      $region9: #{tpu_custom_call.1} parent=5 // pred_check
        _
      $region10: #{tpu_custom_call.1} parent=5 // pred_check_branch
        %168 = sbr.rel (%p165) target = $region12
      $region11: #{tpu_custom_call.1} parent=5 // pred_region
        %s169 = ssub.s32 %s26, 1
        // Predicated region
        $region13: #{tpu_custom_call.1} parent=11 // pred_check
          %p170 = pneg %p87
        $region14: #{tpu_custom_call.1} parent=11 // pred_check_branch
          %172 = sbr.rel (%p170) target = $region16
        $region15: #{tpu_custom_call.1} parent=11 // pred_region
          %174 = vsyncadd [#allocation9], 0
          %s175 = sshll.u32 %s2, 4
          %s176 = int_to_ptr.hbm [resolvable:$true] %s175
          %s177 = sshll.u32 [#allocation8], 4
          %s178 = int_to_ptr.vmem [resolvable:$true] %s177
          %183 = dma.hbm_to_vmem [thread:$0]  %s176, 2048, %s178, [#allocation9], 64, 64, 4
        $region16: #{tpu_custom_call.1} parent=11 // pred_fallthru
          _
        // Predicated region
        $region17: #{tpu_custom_call.1} parent=11 // pred_check
          %p184 = pneg %p108
        $region18: #{tpu_custom_call.1} parent=11 // pred_check_branch
          %186 = sbr.rel (%p184) target = $region20
        $region19: #{tpu_custom_call.1} parent=11 // pred_region
          %188 = vsyncadd [#allocation9], 0
          %s189 = sshll.u32 %s3, 4
          %s190 = int_to_ptr.hbm [resolvable:$true] %s189
          %s191 = sshll.u32 [#allocation10], 4
          %s192 = int_to_ptr.vmem [resolvable:$true] %s191
          %197 = dma.hbm_to_vmem [thread:$0]  %s190, 1024, %s192, [#allocation9], 64, 64, 4
        $region20: #{tpu_custom_call.1} parent=11 // pred_fallthru
          _
        // Predicated region
        $region21: #{tpu_custom_call.1} parent=11 // pred_check
          %p198 = pneg %p129
        $region22: #{tpu_custom_call.1} parent=11 // pred_check_branch
          %200 = sbr.rel (%p198) target = $region24
        $region23: #{tpu_custom_call.1} parent=11 // pred_region
          _
        $region24: #{tpu_custom_call.1} parent=11 // pred_fallthru
          _
      $region12: #{tpu_custom_call.1} parent=5 // pred_fallthru
        _
      %p201 = scmp.lt.s32.totalorder %s26, 2
      // Predicated region
      $region25: #{tpu_custom_call.1} parent=5 // pred_check
        %p202 = pneg %p201
      $region26: #{tpu_custom_call.1} parent=5 // pred_check_branch
        %204 = sbr.rel (%p202) target = $region28
      $region27: #{tpu_custom_call.1} parent=5 // pred_region
        // Predicated region
        $region29: #{tpu_custom_call.1} parent=27 // pred_check
          %p205 = pneg %p60
        $region30: #{tpu_custom_call.1} parent=27 // pred_check_branch
          %207 = sbr.rel (%p205) target = $region32
        $region31: #{tpu_custom_call.1} parent=27 // pred_region
          %s208 = sand.u32 %s50, 1
          %s209 = scalar_lea.sflag [#allocation6], %s208
          %s210 = sand.u32 %s50, 1
          %s211 = smul.addr %s210, 128
          %s212 = scalar_lea.vmem [#allocation5], %s211
          %s213 = smul.u32 16, %s33
          %s214 = smul.u32 2, %s34
          %216 = vsyncadd %s209, 0
          %s217 = smul.addr %s213, 2
          %s218 = sadd.s32 %s214, %s217
          %s219 = smul.addr %s218, 4
          %s220 = scalar_lea.hbm %s1, %s219
          %s221 = sshll.u32 %s220, 4
          %s222 = int_to_ptr.hbm [resolvable:$true] %s221
          %s223 = sshll.u32 %s212, 4
          %s224 = int_to_ptr.vmem [resolvable:$true] %s223
          %229 = dma.hbm_to_vmem [thread:$0]  %s222, 2048, %s224, %s209, 128, 128, 8
        $region32: #{tpu_custom_call.1} parent=27 // pred_fallthru
          _
      $region28: #{tpu_custom_call.1} parent=5 // pred_fallthru
        _
      %p230 = scmp.le.s32.totalorder 1, %s26
      %p231 = scmp.lt.s32.totalorder %s26, 3
      %p232 = pnand %p230, %p231
      %p233 = pneg %p232
      // Predicated region
      $region33: #{tpu_custom_call.1} parent=5 // pred_check
        _
      $region34: #{tpu_custom_call.1} parent=5 // pred_check_branch
        %235 = sbr.rel (%p232) target = $region36
      $region35: #{tpu_custom_call.1} parent=5 // pred_region
        %s236 = ssub.s32 %s26, 1
        %s237 = sand.u32 %s53, 1
        %s238 = scalar_lea.sflag [#allocation6], %s237
        %s239 = sand.u32 %s53, 1
        %s240 = smul.addr %s239, 128
        %s241 = scalar_lea.vmem [#allocation5], %s240
        // Predicated region
        $region37: #{tpu_custom_call.1} parent=35 // pred_check
          %p242 = pneg %p66
        $region38: #{tpu_custom_call.1} parent=35 // pred_check_branch
          %244 = sbr.rel (%p242) target = $region40
        $region39: #{tpu_custom_call.1} parent=35 // pred_region
          %246 = dma.done %s238, 2048
        $region40: #{tpu_custom_call.1} parent=35 // pred_fallthru
          _
        // Predicated region
        $region41: #{tpu_custom_call.1} parent=35 // pred_check
          %p247 = pneg %p87
        $region42: #{tpu_custom_call.1} parent=35 // pred_check_branch
          %249 = sbr.rel (%p247) target = $region44
        $region43: #{tpu_custom_call.1} parent=35 // pred_region
          %251 = dma.done [#allocation9], 2048
        $region44: #{tpu_custom_call.1} parent=35 // pred_fallthru
          _
        // Predicated region
        $region45: #{tpu_custom_call.1} parent=35 // pred_check
          %p252 = pneg %p108
        $region46: #{tpu_custom_call.1} parent=35 // pred_check_branch
          %254 = sbr.rel (%p252) target = $region48
        $region47: #{tpu_custom_call.1} parent=35 // pred_region
          %256 = dma.done [#allocation9], 1024
        $region48: #{tpu_custom_call.1} parent=35 // pred_fallthru
          _
        %s257 = sand.u32 %s53, 1
        %s258 = scalar_lea.sflag [#allocation6], %s257
        %s259 = sand.u32 %s53, 1
        %s260 = smul.addr %s259, 128
        %s261 = scalar_lea.vmem [#allocation5], %s260
        %p262 = pneg %p66
        %p263 = pneg %p63
        %p264 = pneg %p87
        %p265 = pneg %p84
        %p266 = pneg %p108
        %p267 = pneg %p105
        %p268 = pneg %p129
        %p269 = pneg %p126
        %p270 = pneg %p155
        %p271 = pneg %p152
        %s272 = sand.u32 %s142, 1
        %s273 = scalar_lea.sflag [#allocation7], %s272
        %s274 = sand.u32 %s142, 1
        %s275 = smul.addr %s274, 128
        %s276 = scalar_lea.vmem [#allocation11], %s275
        %s277 = smul.u32 16, %s35
        %s278 = smul.u32 2, %s36
        %s279 = smul.u32 16, %s35
        %p280 = scmp.eq.s32.totalorder %s36, 0
        // Predicated region
        $region49: #{tpu_custom_call.1} parent=35 // pred_check
          %p281 = pneg %p280
        $region50: #{tpu_custom_call.1} parent=35 // pred_check_branch
          %283 = sbr.rel (%p281) target = $region52
        $region51: #{tpu_custom_call.1} parent=35 // pred_region
          %284 = vst [vmem:[#allocation2] sm:$0xff] 0.0
          %285 = vst [vmem:[#allocation2 + $0x8] sm:$0xff] 0.0
          %286 = vst [vmem:[#allocation2 + $0x10] sm:$0xff] 0.0
          %287 = vst [vmem:[#allocation2 + $0x18] sm:$0xff] 0.0
          %288 = vst [vmem:[#allocation2 + $0x20] sm:$0xff] 0.0
          %289 = vst [vmem:[#allocation2 + $0x28] sm:$0xff] 0.0
          %290 = vst [vmem:[#allocation2 + $0x30] sm:$0xff] 0.0
          %291 = vst [vmem:[#allocation2 + $0x38] sm:$0xff] 0.0
          %292 = vst [vmem:[#allocation2 + $0x40] sm:$0xff] 0.0
          %293 = vst [vmem:[#allocation2 + $0x48] sm:$0xff] 0.0
          %294 = vst [vmem:[#allocation2 + $0x50] sm:$0xff] 0.0
          %295 = vst [vmem:[#allocation2 + $0x58] sm:$0xff] 0.0
          %296 = vst [vmem:[#allocation2 + $0x60] sm:$0xff] 0.0
          %297 = vst [vmem:[#allocation2 + $0x68] sm:$0xff] 0.0
          %298 = vst [vmem:[#allocation2 + $0x70] sm:$0xff] 0.0
          %299 = vst [vmem:[#allocation2 + $0x78] sm:$0xff] 0.0
        $region52: #{tpu_custom_call.1} parent=35 // pred_fallthru
          _
        %s300 = sadd.s32 %s35, %s36
        %s301 = sld [smem:[#allocation4 + %s300]]
        %p302 = scmp.ne.s32.totalorder %s301, 0
        // Predicated region
        $region53: #{tpu_custom_call.1} parent=35 // pred_check
          %p303 = pneg %p302
        $region54: #{tpu_custom_call.1} parent=35 // pred_check_branch
          %305 = sbr.rel (%p303) target = $region56
        $region55: #{tpu_custom_call.1} parent=35 // pred_region
          %v306 = vld [vmem:[#allocation2] sm:$0xff]
          %v307 = vld [vmem:[#allocation2 + $0x8] sm:$0xff]
          %v308 = vld [vmem:[#allocation2 + $0x10] sm:$0xff]
          %v309 = vld [vmem:[#allocation2 + $0x18] sm:$0xff]
          %v310 = vld [vmem:[#allocation2 + $0x20] sm:$0xff]
          %v311 = vld [vmem:[#allocation2 + $0x28] sm:$0xff]
          %v312 = vld [vmem:[#allocation2 + $0x30] sm:$0xff]
          %v313 = vld [vmem:[#allocation2 + $0x38] sm:$0xff]
          %v314 = vld [vmem:[#allocation2 + $0x40] sm:$0xff]
          %v315 = vld [vmem:[#allocation2 + $0x48] sm:$0xff]
          %v316 = vld [vmem:[#allocation2 + $0x50] sm:$0xff]
          %v317 = vld [vmem:[#allocation2 + $0x58] sm:$0xff]
          %v318 = vld [vmem:[#allocation2 + $0x60] sm:$0xff]
          %v319 = vld [vmem:[#allocation2 + $0x68] sm:$0xff]
          %v320 = vld [vmem:[#allocation2 + $0x70] sm:$0xff]
          %v321 = vld [vmem:[#allocation2 + $0x78] sm:$0xff]
          %v322 = vld [vmem:[%s241] sm:$0xff]
          %v323 = vld [vmem:[%s241 + $0x8] sm:$0xff]
          %v324 = vld [vmem:[%s241 + $0x10] sm:$0xff]
          %v325 = vld [vmem:[%s241 + $0x18] sm:$0xff]
          %v326 = vld [vmem:[%s241 + $0x20] sm:$0xff]
          %v327 = vld [vmem:[%s241 + $0x28] sm:$0xff]
          %v328 = vld [vmem:[%s241 + $0x30] sm:$0xff]
          %v329 = vld [vmem:[%s241 + $0x38] sm:$0xff]
          %v330 = vld [vmem:[%s241 + $0x40] sm:$0xff]
          %v331 = vld [vmem:[%s241 + $0x48] sm:$0xff]
          %v332 = vld [vmem:[%s241 + $0x50] sm:$0xff]
          %v333 = vld [vmem:[%s241 + $0x58] sm:$0xff]
          %v334 = vld [vmem:[%s241 + $0x60] sm:$0xff]
          %v335 = vld [vmem:[%s241 + $0x68] sm:$0xff]
          %v336 = vld [vmem:[%s241 + $0x70] sm:$0xff]
          %v337 = vld [vmem:[%s241 + $0x78] sm:$0xff]
          %s338 = smul.u32 %s36, 256
          %s339 = sshra.s32 %s338, 3
          %s340 = sand.u32 %s338, 7
          %s341 = smul.addr %s339, 4
          %s342 = scalar_lea.vmem [#allocation8], %s341
          %v343 = vld [vmem:[%s342] sm:$0xf]
          %v344 = vld [vmem:[%s342 + $0x4] sm:$0xf]
          %v345 = vld [vmem:[%s342 + $0x8] sm:$0xf]
          %v346 = vld [vmem:[%s342 + $0xc] sm:$0xf]
          %v347 = vld [vmem:[%s342 + $0x10] sm:$0xf]
          %v348 = vld [vmem:[%s342 + $0x14] sm:$0xf]
          %v349 = vld [vmem:[%s342 + $0x18] sm:$0xf]
          %v350 = vld [vmem:[%s342 + $0x1c] sm:$0xf]
          %v351 = vld [vmem:[%s342 + $0x20] sm:$0xf]
          %v352 = vld [vmem:[%s342 + $0x24] sm:$0xf]
          %v353 = vld [vmem:[%s342 + $0x28] sm:$0xf]
          %v354 = vld [vmem:[%s342 + $0x2c] sm:$0xf]
          %v355 = vld [vmem:[%s342 + $0x30] sm:$0xf]
          %v356 = vld [vmem:[%s342 + $0x34] sm:$0xf]
          %v357 = vld [vmem:[%s342 + $0x38] sm:$0xf]
          %v358 = vld [vmem:[%s342 + $0x3c] sm:$0xf]
          %v359 = vld [vmem:[%s342 + $0x40] sm:$0xf]
          %v360 = vld [vmem:[%s342 + $0x44] sm:$0xf]
          %v361 = vld [vmem:[%s342 + $0x48] sm:$0xf]
          %v362 = vld [vmem:[%s342 + $0x4c] sm:$0xf]
          %v363 = vld [vmem:[%s342 + $0x50] sm:$0xf]
          %v364 = vld [vmem:[%s342 + $0x54] sm:$0xf]
          %v365 = vld [vmem:[%s342 + $0x58] sm:$0xf]
          %v366 = vld [vmem:[%s342 + $0x5c] sm:$0xf]
          %v367 = vld [vmem:[%s342 + $0x60] sm:$0xf]
          %v368 = vld [vmem:[%s342 + $0x64] sm:$0xf]
          %v369 = vld [vmem:[%s342 + $0x68] sm:$0xf]
          %v370 = vld [vmem:[%s342 + $0x6c] sm:$0xf]
          %v371 = vld [vmem:[%s342 + $0x70] sm:$0xf]
          %v372 = vld [vmem:[%s342 + $0x74] sm:$0xf]
          %v373 = vld [vmem:[%s342 + $0x78] sm:$0xf]
          %v374 = vld [vmem:[%s342 + $0x7c] sm:$0xf]
          %v391 = vunpack.c.l.b16 %v322
          %v392 = vunpack.c.h.b16 %v322
          %v393 = vunpack.c.l.b16 %v323
          %v394 = vunpack.c.h.b16 %v323
          %v395 = vunpack.c.l.b16 %v324
          %v396 = vunpack.c.h.b16 %v324
          %v397 = vunpack.c.l.b16 %v325
          %v398 = vunpack.c.h.b16 %v325
          %v399 = vunpack.c.l.b16 %v326
          %v400 = vunpack.c.h.b16 %v326
          %v401 = vunpack.c.l.b16 %v327
          %v402 = vunpack.c.h.b16 %v327
          %v403 = vunpack.c.l.b16 %v328
          %v404 = vunpack.c.h.b16 %v328
          %v405 = vunpack.c.l.b16 %v329
          %v406 = vunpack.c.h.b16 %v329
          %v407 = vunpack.c.l.b16 %v330
          %v408 = vunpack.c.h.b16 %v330
          %v409 = vunpack.c.l.b16 %v331
          %v410 = vunpack.c.h.b16 %v331
          %v411 = vunpack.c.l.b16 %v332
          %v412 = vunpack.c.h.b16 %v332
          %v413 = vunpack.c.l.b16 %v333
          %v414 = vunpack.c.h.b16 %v333
          %v415 = vunpack.c.l.b16 %v334
          %v416 = vunpack.c.h.b16 %v334
          %v417 = vunpack.c.l.b16 %v335
          %v418 = vunpack.c.h.b16 %v335
          %v419 = vunpack.c.l.b16 %v336
          %v420 = vunpack.c.h.b16 %v336
          %v421 = vunpack.c.l.b16 %v337
          %v422 = vunpack.c.h.b16 %v337
          %v423 = vpack.c.b16 %v393, %v391
          %v424 = vpack.c.b16 %v394, %v392
          %v425 = vpack.c.b16 %v397, %v395
          %v426 = vpack.c.b16 %v398, %v396
          %v427 = vpack.c.b16 %v401, %v399
          %v428 = vpack.c.b16 %v402, %v400
          %v429 = vpack.c.b16 %v405, %v403
          %v430 = vpack.c.b16 %v406, %v404
          %v431 = vpack.c.b16 %v409, %v407
          %v432 = vpack.c.b16 %v410, %v408
          %v433 = vpack.c.b16 %v413, %v411
          %v434 = vpack.c.b16 %v414, %v412
          %v435 = vpack.c.b16 %v417, %v415
          %v436 = vpack.c.b16 %v418, %v416
          %v437 = vpack.c.b16 %v421, %v419
          %v438 = vpack.c.b16 %v422, %v420
          %v487 = vunpack.c.l.b16 %v343
          %v488 = vunpack.c.l.b16 %v344
          %v489 = vunpack.c.l.b16 %v345
          %v490 = vunpack.c.l.b16 %v346
          %v491 = vunpack.c.l.b16 %v347
          %v492 = vunpack.c.l.b16 %v348
          %v493 = vunpack.c.l.b16 %v349
          %v494 = vunpack.c.l.b16 %v350
          %v495 = vunpack.c.l.b16 %v351
          %v496 = vunpack.c.l.b16 %v352
          %v497 = vunpack.c.l.b16 %v353
          %v498 = vunpack.c.l.b16 %v354
          %v499 = vunpack.c.l.b16 %v355
          %v500 = vunpack.c.l.b16 %v356
          %v501 = vunpack.c.l.b16 %v357
          %v502 = vunpack.c.l.b16 %v358
          %v503 = vunpack.c.l.b16 %v359
          %v504 = vunpack.c.l.b16 %v360
          %v505 = vunpack.c.l.b16 %v361
          %v506 = vunpack.c.l.b16 %v362
          %v507 = vunpack.c.l.b16 %v363
          %v508 = vunpack.c.l.b16 %v364
          %v509 = vunpack.c.l.b16 %v365
          %v510 = vunpack.c.l.b16 %v366
          %v511 = vunpack.c.l.b16 %v367
          %v512 = vunpack.c.l.b16 %v368
          %v513 = vunpack.c.l.b16 %v369
          %v514 = vunpack.c.l.b16 %v370
          %v515 = vunpack.c.l.b16 %v371
          %v516 = vunpack.c.l.b16 %v372
          %v517 = vunpack.c.l.b16 %v373
          %v518 = vunpack.c.l.b16 %v374
          %v519 = vpack.c.b16 %v488, %v487
          %v520 = vpack.c.b16 %v490, %v489
          %v521 = vpack.c.b16 %v492, %v491
          %v522 = vpack.c.b16 %v494, %v493
          %v523 = vpack.c.b16 %v496, %v495
          %v524 = vpack.c.b16 %v498, %v497
          %v525 = vpack.c.b16 %v500, %v499
          %v526 = vpack.c.b16 %v502, %v501
          %v527 = vpack.c.b16 %v504, %v503
          %v528 = vpack.c.b16 %v506, %v505
          %v529 = vpack.c.b16 %v508, %v507
          %v530 = vpack.c.b16 %v510, %v509
          %v531 = vpack.c.b16 %v512, %v511
          %v532 = vpack.c.b16 %v514, %v513
          %v533 = vpack.c.b16 %v516, %v515
          %v534 = vpack.c.b16 %v518, %v517
          %551 = vmatpush.bf16.msra.mxu0 %v526
          %552 = vmatpush.bf16.msra.mxu0 %v525
          %553 = vmatpush.bf16.msra.mxu0 %v524
          %554 = vmatpush.bf16.msra.mxu0 %v523
          %555 = vmatpush.bf16.msra.mxu0 %v522
          %556 = vmatpush.bf16.msra.mxu0 %v521
          %557 = vmatpush.bf16.msra.mxu0 %v520
          %558 = vmatpush.bf16.msra.mxu0 %v519
          %559 = vmatmul.bf16.gmra.mxu0 %v423
          %v560 = vpop.f32.mrf.mxu0
          %v561 = vadd.f32 0.0, %v560
          %v562 = vpop.f32.mrf.mxu0
          %v563 = vadd.f32 0.0, %v562
          %564 = vmatmul.bf16.gmra.mxu0 %v425
          %v565 = vpop.f32.mrf.mxu0
          %v566 = vadd.f32 0.0, %v565
          %v567 = vpop.f32.mrf.mxu0
          %v568 = vadd.f32 0.0, %v567
          %569 = vmatmul.bf16.gmra.mxu0 %v427
          %v570 = vpop.f32.mrf.mxu0
          %v571 = vadd.f32 0.0, %v570
          %v572 = vpop.f32.mrf.mxu0
          %v573 = vadd.f32 0.0, %v572
          %574 = vmatmul.bf16.gmra.mxu0 %v429
          %v575 = vpop.f32.mrf.mxu0
          %v576 = vadd.f32 0.0, %v575
          %v577 = vpop.f32.mrf.mxu0
          %v578 = vadd.f32 0.0, %v577
          %579 = vmatmul.bf16.gmra.mxu0 %v431
          %v580 = vpop.f32.mrf.mxu0
          %v581 = vadd.f32 0.0, %v580
          %v582 = vpop.f32.mrf.mxu0
          %v583 = vadd.f32 0.0, %v582
          %584 = vmatmul.bf16.gmra.mxu0 %v433
          %v585 = vpop.f32.mrf.mxu0
          %v586 = vadd.f32 0.0, %v585
          %v587 = vpop.f32.mrf.mxu0
          %v588 = vadd.f32 0.0, %v587
          %589 = vmatmul.bf16.gmra.mxu0 %v435
          %v590 = vpop.f32.mrf.mxu0
          %v591 = vadd.f32 0.0, %v590
          %v592 = vpop.f32.mrf.mxu0
          %v593 = vadd.f32 0.0, %v592
          %594 = vmatmul.bf16.gmra.mxu0 %v437
          %v595 = vpop.f32.mrf.mxu0
          %v596 = vadd.f32 0.0, %v595
          %v597 = vpop.f32.mrf.mxu0
          %v598 = vadd.f32 0.0, %v597
          %599 = vdwg.mxu0
          %600 = vmatpush.bf16.msra.mxu0 %v534
          %601 = vmatpush.bf16.msra.mxu0 %v533
          %602 = vmatpush.bf16.msra.mxu0 %v532
          %603 = vmatpush.bf16.msra.mxu0 %v531
          %604 = vmatpush.bf16.msra.mxu0 %v530
          %605 = vmatpush.bf16.msra.mxu0 %v529
          %606 = vmatpush.bf16.msra.mxu0 %v528
          %607 = vmatpush.bf16.msra.mxu0 %v527
          %608 = vmatmul.bf16.gmra.mxu0 %v424
          %v609 = vpop.f32.mrf.mxu0
          %v610 = vadd.f32 %v561, %v609
          %v611 = vpop.f32.mrf.mxu0
          %v612 = vadd.f32 %v563, %v611
          %613 = vmatmul.bf16.gmra.mxu0 %v426
          %v614 = vpop.f32.mrf.mxu0
          %v615 = vadd.f32 %v566, %v614
          %v616 = vpop.f32.mrf.mxu0
          %v617 = vadd.f32 %v568, %v616
          %618 = vmatmul.bf16.gmra.mxu0 %v428
          %v619 = vpop.f32.mrf.mxu0
          %v620 = vadd.f32 %v571, %v619
          %v621 = vpop.f32.mrf.mxu0
          %v622 = vadd.f32 %v573, %v621
          %623 = vmatmul.bf16.gmra.mxu0 %v430
          %v624 = vpop.f32.mrf.mxu0
          %v625 = vadd.f32 %v576, %v624
          %v626 = vpop.f32.mrf.mxu0
          %v627 = vadd.f32 %v578, %v626
          %628 = vmatmul.bf16.gmra.mxu0 %v432
          %v629 = vpop.f32.mrf.mxu0
          %v630 = vadd.f32 %v581, %v629
          %v631 = vpop.f32.mrf.mxu0
          %v632 = vadd.f32 %v583, %v631
          %633 = vmatmul.bf16.gmra.mxu0 %v434
          %v634 = vpop.f32.mrf.mxu0
          %v635 = vadd.f32 %v586, %v634
          %v636 = vpop.f32.mrf.mxu0
          %v637 = vadd.f32 %v588, %v636
          %638 = vmatmul.bf16.gmra.mxu0 %v436
          %v639 = vpop.f32.mrf.mxu0
          %v640 = vadd.f32 %v591, %v639
          %v641 = vpop.f32.mrf.mxu0
          %v642 = vadd.f32 %v593, %v641
          %643 = vmatmul.bf16.gmra.mxu0 %v438
          %v644 = vpop.f32.mrf.mxu0
          %v645 = vadd.f32 %v596, %v644
          %v646 = vpop.f32.mrf.mxu0
          %v647 = vadd.f32 %v598, %v646
          %648 = vdwg.mxu0
          %v649 = vadd.f32 %v306, %v610
          %v650 = vadd.f32 %v307, %v612
          %v651 = vadd.f32 %v308, %v615
          %v652 = vadd.f32 %v309, %v617
          %v653 = vadd.f32 %v310, %v620
          %v654 = vadd.f32 %v311, %v622
          %v655 = vadd.f32 %v312, %v625
          %v656 = vadd.f32 %v313, %v627
          %v657 = vadd.f32 %v314, %v630
          %v658 = vadd.f32 %v315, %v632
          %v659 = vadd.f32 %v316, %v635
          %v660 = vadd.f32 %v317, %v637
          %v661 = vadd.f32 %v318, %v640
          %v662 = vadd.f32 %v319, %v642
          %v663 = vadd.f32 %v320, %v645
          %v664 = vadd.f32 %v321, %v647
          %665 = vst [vmem:[#allocation2] sm:$0xff] %v649
          %666 = vst [vmem:[#allocation2 + $0x8] sm:$0xff] %v650
          %667 = vst [vmem:[#allocation2 + $0x10] sm:$0xff] %v651
          %668 = vst [vmem:[#allocation2 + $0x18] sm:$0xff] %v652
          %669 = vst [vmem:[#allocation2 + $0x20] sm:$0xff] %v653
          %670 = vst [vmem:[#allocation2 + $0x28] sm:$0xff] %v654
          %671 = vst [vmem:[#allocation2 + $0x30] sm:$0xff] %v655
          %672 = vst [vmem:[#allocation2 + $0x38] sm:$0xff] %v656
          %673 = vst [vmem:[#allocation2 + $0x40] sm:$0xff] %v657
          %674 = vst [vmem:[#allocation2 + $0x48] sm:$0xff] %v658
          %675 = vst [vmem:[#allocation2 + $0x50] sm:$0xff] %v659
          %676 = vst [vmem:[#allocation2 + $0x58] sm:$0xff] %v660
          %677 = vst [vmem:[#allocation2 + $0x60] sm:$0xff] %v661
          %678 = vst [vmem:[#allocation2 + $0x68] sm:$0xff] %v662
          %679 = vst [vmem:[#allocation2 + $0x70] sm:$0xff] %v663
          %680 = vst [vmem:[#allocation2 + $0x78] sm:$0xff] %v664
        $region56: #{tpu_custom_call.1} parent=35 // pred_fallthru
          _
        // Predicated region
        $region57: #{tpu_custom_call.1} parent=35 // pred_check
          %p681 = pneg %p280
        $region58: #{tpu_custom_call.1} parent=35 // pred_check_branch
          %683 = sbr.rel (%p681) target = $region60
        $region59: #{tpu_custom_call.1} parent=35 // pred_region
          %v684 = vld [vmem:[#allocation2] sm:$0xff]
          %v685 = vld [vmem:[#allocation2 + $0x8] sm:$0xff]
          %v686 = vld [vmem:[#allocation2 + $0x10] sm:$0xff]
          %v687 = vld [vmem:[#allocation2 + $0x18] sm:$0xff]
          %v688 = vld [vmem:[#allocation2 + $0x20] sm:$0xff]
          %v689 = vld [vmem:[#allocation2 + $0x28] sm:$0xff]
          %v690 = vld [vmem:[#allocation2 + $0x30] sm:$0xff]
          %v691 = vld [vmem:[#allocation2 + $0x38] sm:$0xff]
          %v692 = vld [vmem:[#allocation2 + $0x40] sm:$0xff]
          %v693 = vld [vmem:[#allocation2 + $0x48] sm:$0xff]
          %v694 = vld [vmem:[#allocation2 + $0x50] sm:$0xff]
          %v695 = vld [vmem:[#allocation2 + $0x58] sm:$0xff]
          %v696 = vld [vmem:[#allocation2 + $0x60] sm:$0xff]
          %v697 = vld [vmem:[#allocation2 + $0x68] sm:$0xff]
          %v698 = vld [vmem:[#allocation2 + $0x70] sm:$0xff]
          %v699 = vld [vmem:[#allocation2 + $0x78] sm:$0xff]
          %v700 = vpack.c.bf16 %v685, %v684
          %v701 = vpack.c.bf16 %v687, %v686
          %v702 = vpack.c.bf16 %v689, %v688
          %v703 = vpack.c.bf16 %v691, %v690
          %v704 = vpack.c.bf16 %v693, %v692
          %v705 = vpack.c.bf16 %v695, %v694
          %v706 = vpack.c.bf16 %v697, %v696
          %v707 = vpack.c.bf16 %v699, %v698
          %v708 = vld [vmem:[#allocation10] sm:$0xf]
          %v709 = vld [vmem:[#allocation10 + $0x4] sm:$0xf]
          %v710 = vld [vmem:[#allocation10 + $0x8] sm:$0xf]
          %v711 = vld [vmem:[#allocation10 + $0xc] sm:$0xf]
          %v712 = vld [vmem:[#allocation10 + $0x10] sm:$0xf]
          %v713 = vld [vmem:[#allocation10 + $0x14] sm:$0xf]
          %v714 = vld [vmem:[#allocation10 + $0x18] sm:$0xf]
          %v715 = vld [vmem:[#allocation10 + $0x1c] sm:$0xf]
          %v716 = vld [vmem:[#allocation10 + $0x20] sm:$0xf]
          %v717 = vld [vmem:[#allocation10 + $0x24] sm:$0xf]
          %v718 = vld [vmem:[#allocation10 + $0x28] sm:$0xf]
          %v719 = vld [vmem:[#allocation10 + $0x2c] sm:$0xf]
          %v720 = vld [vmem:[#allocation10 + $0x30] sm:$0xf]
          %v721 = vld [vmem:[#allocation10 + $0x34] sm:$0xf]
          %v722 = vld [vmem:[#allocation10 + $0x38] sm:$0xf]
          %v723 = vld [vmem:[#allocation10 + $0x3c] sm:$0xf]
          %v724 = vld [vmem:[%s4] sm:$0x1]
          %v726 = vperm.slane %v724, 0
          %v744 = vunpack.c.l.b16 %v708
          %v745 = vunpack.c.l.b16 %v709
          %v746 = vunpack.c.l.b16 %v710
          %v747 = vunpack.c.l.b16 %v711
          %v748 = vunpack.c.l.b16 %v712
          %v749 = vunpack.c.l.b16 %v713
          %v750 = vunpack.c.l.b16 %v714
          %v751 = vunpack.c.l.b16 %v715
          %v752 = vunpack.c.l.b16 %v716
          %v753 = vunpack.c.l.b16 %v717
          %v754 = vunpack.c.l.b16 %v718
          %v755 = vunpack.c.l.b16 %v719
          %v756 = vunpack.c.l.b16 %v720
          %v757 = vunpack.c.l.b16 %v721
          %v758 = vunpack.c.l.b16 %v722
          %v759 = vunpack.c.l.b16 %v723
          %v760 = vpack.c.b16 %v745, %v744
          %v761 = vpack.c.b16 %v747, %v746
          %v762 = vpack.c.b16 %v749, %v748
          %v763 = vpack.c.b16 %v751, %v750
          %v764 = vpack.c.b16 %v753, %v752
          %v765 = vpack.c.b16 %v755, %v754
          %v766 = vpack.c.b16 %v757, %v756
          %v767 = vpack.c.b16 %v759, %v758
          %776 = vmatpush.bf16.msra.mxu0 %v767
          %777 = vmatpush.bf16.msra.mxu0 %v766
          %778 = vmatpush.bf16.msra.mxu0 %v765
          %779 = vmatpush.bf16.msra.mxu0 %v764
          %780 = vmatpush.bf16.msra.mxu0 %v763
          %781 = vmatpush.bf16.msra.mxu0 %v762
          %782 = vmatpush.bf16.msra.mxu0 %v761
          %783 = vmatpush.bf16.msra.mxu0 %v760
          %784 = vmatmul.bf16.gmra.mxu0 %v700
          %v785 = vpop.f32.mrf.mxu0
          %v786 = vadd.f32 %v726, %v785
          %v787 = vpop.f32.mrf.mxu0
          %v788 = vadd.f32 %v726, %v787
          %789 = vmatmul.bf16.gmra.mxu0 %v701
          %v790 = vpop.f32.mrf.mxu0
          %v791 = vadd.f32 %v726, %v790
          %v792 = vpop.f32.mrf.mxu0
          %v793 = vadd.f32 %v726, %v792
          %794 = vmatmul.bf16.gmra.mxu0 %v702
          %v795 = vpop.f32.mrf.mxu0
          %v796 = vadd.f32 %v726, %v795
          %v797 = vpop.f32.mrf.mxu0
          %v798 = vadd.f32 %v726, %v797
          %799 = vmatmul.bf16.gmra.mxu0 %v703
          %v800 = vpop.f32.mrf.mxu0
          %v801 = vadd.f32 %v726, %v800
          %v802 = vpop.f32.mrf.mxu0
          %v803 = vadd.f32 %v726, %v802
          %804 = vmatmul.bf16.gmra.mxu0 %v704
          %v805 = vpop.f32.mrf.mxu0
          %v806 = vadd.f32 %v726, %v805
          %v807 = vpop.f32.mrf.mxu0
          %v808 = vadd.f32 %v726, %v807
          %809 = vmatmul.bf16.gmra.mxu0 %v705
          %v810 = vpop.f32.mrf.mxu0
          %v811 = vadd.f32 %v726, %v810
          %v812 = vpop.f32.mrf.mxu0
          %v813 = vadd.f32 %v726, %v812
          %814 = vmatmul.bf16.gmra.mxu0 %v706
          %v815 = vpop.f32.mrf.mxu0
          %v816 = vadd.f32 %v726, %v815
          %v817 = vpop.f32.mrf.mxu0
          %v818 = vadd.f32 %v726, %v817
          %819 = vmatmul.bf16.gmra.mxu0 %v707
          %v820 = vpop.f32.mrf.mxu0
          %v821 = vadd.f32 %v726, %v820
          %v822 = vpop.f32.mrf.mxu0
          %v823 = vadd.f32 %v726, %v822
          %824 = vdwg.mxu0
          %v825 = vmax.f32 %v786, 0.0
          %v826 = vmax.f32 %v788, 0.0
          %v827 = vmax.f32 %v791, 0.0
          %v828 = vmax.f32 %v793, 0.0
          %v829 = vmax.f32 %v796, 0.0
          %v830 = vmax.f32 %v798, 0.0
          %v831 = vmax.f32 %v801, 0.0
          %v832 = vmax.f32 %v803, 0.0
          %v833 = vmax.f32 %v806, 0.0
          %v834 = vmax.f32 %v808, 0.0
          %v835 = vmax.f32 %v811, 0.0
          %v836 = vmax.f32 %v813, 0.0
          %v837 = vmax.f32 %v816, 0.0
          %v838 = vmax.f32 %v818, 0.0
          %v839 = vmax.f32 %v821, 0.0
          %v840 = vmax.f32 %v823, 0.0
          %841 = vst [vmem:[%s276] sm:$0xff] %v825
          %842 = vst [vmem:[%s276 + $0x8] sm:$0xff] %v826
          %843 = vst [vmem:[%s276 + $0x10] sm:$0xff] %v827
          %844 = vst [vmem:[%s276 + $0x18] sm:$0xff] %v828
          %845 = vst [vmem:[%s276 + $0x20] sm:$0xff] %v829
          %846 = vst [vmem:[%s276 + $0x28] sm:$0xff] %v830
          %847 = vst [vmem:[%s276 + $0x30] sm:$0xff] %v831
          %848 = vst [vmem:[%s276 + $0x38] sm:$0xff] %v832
          %849 = vst [vmem:[%s276 + $0x40] sm:$0xff] %v833
          %850 = vst [vmem:[%s276 + $0x48] sm:$0xff] %v834
          %851 = vst [vmem:[%s276 + $0x50] sm:$0xff] %v835
          %852 = vst [vmem:[%s276 + $0x58] sm:$0xff] %v836
          %853 = vst [vmem:[%s276 + $0x60] sm:$0xff] %v837
          %854 = vst [vmem:[%s276 + $0x68] sm:$0xff] %v838
          %855 = vst [vmem:[%s276 + $0x70] sm:$0xff] %v839
          %856 = vst [vmem:[%s276 + $0x78] sm:$0xff] %v840
        $region60: #{tpu_custom_call.1} parent=35 // pred_fallthru
          _
        %s857 = sand.u32 %s142, 1
        %s858 = scalar_lea.sflag [#allocation7], %s857
        %s859 = sand.u32 %s142, 1
        %s860 = smul.addr %s859, 128
        %s861 = scalar_lea.vmem [#allocation11], %s860
        // Predicated region
        $region61: #{tpu_custom_call.1} parent=35 // pred_check
          %p862 = pneg %p152
        $region62: #{tpu_custom_call.1} parent=35 // pred_check_branch
          %864 = sbr.rel (%p862) target = $region64
        $region63: #{tpu_custom_call.1} parent=35 // pred_region
          %s865 = smul.u32 16, %s35
          %867 = vsyncadd %s858, 0
          %s868 = smul.addr %s865, 8
          %s869 = scalar_lea.hbm %s5, %s868
          %s870 = sshll.u32 %s861, 4
          %s871 = int_to_ptr.vmem [resolvable:$true] %s870
          %s872 = sshll.u32 %s869, 4
          %s873 = int_to_ptr.hbm [resolvable:$true] %s872
          %878 = dma.vmem_to_hbm [thread:$0]  %s871, 2048, %s873, %s858, 128, 128, 8
        $region64: #{tpu_custom_call.1} parent=35 // pred_fallthru
          _
      $region36: #{tpu_custom_call.1} parent=5 // pred_fallthru
        _
      %p879 = scmp.le.s32.totalorder 2, %s26
      // Predicated region
      $region65: #{tpu_custom_call.1} parent=5 // pred_check
        %p880 = pneg %p879
      $region66: #{tpu_custom_call.1} parent=5 // pred_check_branch
        %882 = sbr.rel (%p880) target = $region68
      $region67: #{tpu_custom_call.1} parent=5 // pred_region
        %s883 = ssub.s32 %s26, 2
        // Predicated region
        $region69: #{tpu_custom_call.1} parent=67 // pred_check
          %p884 = pneg %p158
        $region70: #{tpu_custom_call.1} parent=67 // pred_check_branch
          %886 = sbr.rel (%p884) target = $region72
        $region71: #{tpu_custom_call.1} parent=67 // pred_region
          %s887 = sand.u32 %s143, 1
          %s888 = scalar_lea.sflag [#allocation7], %s887
          %s889 = sand.u32 %s143, 1
          %s890 = smul.addr %s889, 128
          %s891 = scalar_lea.vmem [#allocation11], %s890
          %893 = dma.done %s888, 2048
        $region72: #{tpu_custom_call.1} parent=67 // pred_fallthru
          _
      $region68: #{tpu_custom_call.1} parent=5 // pred_fallthru
        _
    $region6: #{tpu_custom_call.1} parent=1 // loop_footer
      %s30 = sadd.s32 1, %s26
    $region7: #{tpu_custom_call.1} parent=1 // loop_footer_branch
      %25 = sbr.rel target = $region3
    $region8: #{tpu_custom_call.1} parent=1 // loop_exit
      _
    %894 = vsyncpa [#allocation6], 1
    %s895 = scalar_lea.sflag [#allocation6], 1
    %896 = vsyncpa %s895, 1
    %897 = vsyncpa [#allocation9], 1
    %898 = vsyncpa [#allocation7], 1
    %s899 = scalar_lea.sflag [#allocation7], 1
    %900 = vsyncpa %s899, 1

</llo_original>
